<compile_context>
chip_gen: v5e
topology: v5e:2x2
jax: 0.10.0
libtpu: 0.0.40
codegen_flags: <defaults>
</compile_context>

<pallas_src>
import functools
from typing import NamedTuple

import jax
import jax.numpy as jnp
from jax.experimental import pallas as pl
from jax.experimental.pallas import tpu as pltpu

LANE = 128
_MIB = 1 << 20


def _round_up(n, m):
    return ((n + m - 1) // m) * m


def _pad2(a, rows, cols):
    r, c = a.shape
    return jnp.pad(a, ((0, rows - r), (0, cols - c)))


class GuideParams(NamedTuple):
    """Padded / bf16-cast encoder parameters (built once by prepare_params)."""
    w1: jax.Array     # (D,  Hp)  compute dtype
    b1: jax.Array     # (1,  Hp)  f32
    w2: jax.Array     # (Hp, Hp)  compute dtype
    b2: jax.Array     # (1,  Hp)  f32
    wh: jax.Array     # (Hp, 2*half)  fused [Wmu || Wsig], compute dtype
    bh: jax.Array     # (1,  2*half)  f32
    data_dim: int
    hidden_p: int
    z_dim: int
    half: int         # lane offset of the sigma half
    head_n: int       # 2 * half (multiple of 128)


def prepare_params(params, *, compute_dtype=jnp.bfloat16):
    """One-time prep: pad feature dims to 128 lanes, fuse heads, cast to bf16.

    Call this ONCE (outside the training/inference hot loop) and reuse the
    result; this hoists all HBM pad/cast passes over the weights out of the
    per-call path.
    """
    w1, b1, w2, b2, wmu, bmu, wsig, bsig = params
    D, H = w1.shape
    Z = wmu.shape[1]

    Hp = _round_up(H, LANE)
    half = _round_up(Z, LANE // 2)     # mu lanes [0, half), sigma lanes [half, 2*half)
    head_n = 2 * half                  # multiple of 128 -> lane-dense output slab

    row = lambda b: b.reshape(1, -1)
    w1p = _pad2(w1, D, Hp).astype(compute_dtype)          # D left unpadded (full-dim block)
    w2p = _pad2(w2, Hp, Hp).astype(compute_dtype)
    whp = jnp.concatenate(
        [_pad2(wmu, Hp, half), _pad2(wsig, Hp, half)], axis=1).astype(compute_dtype)
    b1p = _pad2(row(b1), 1, Hp).astype(jnp.float32)
    b2p = _pad2(row(b2), 1, Hp).astype(jnp.float32)
    bhp = jnp.concatenate(
        [_pad2(row(bmu), 1, half), _pad2(row(bsig), 1, half)], axis=1).astype(jnp.float32)

    return GuideParams(w1=w1p, b1=b1p, w2=w2p, b2=b2p, wh=whp, bh=bhp,
                       data_dim=D, hidden_p=Hp, z_dim=Z, half=half, head_n=head_n)


def guide_encoder_kernel(x_ref, w1_ref, b1_ref, w2_ref, b2_ref,
                         wh_ref, bh_ref, out_ref, *, zp, split_softplus):
    """Fused Encoder MLP: 3 MXU matmuls + f32 epilogue, lane-dense stores."""
    cdt = w1_ref.dtype  # compute dtype (bf16); x is cast in-kernel (no wrapper pass)

    h1 = jnp.dot(x_ref[...].astype(cdt), w1_ref[...],
                 preferred_element_type=jnp.float32) + b1_ref[...]
    h1 = jnp.maximum(h1, 0.0)
    h2 = jnp.dot(h1.astype(cdt), w2_ref[...],
                 preferred_element_type=jnp.float32) + b2_ref[...]
    h2 = jnp.maximum(h2, 0.0)

    # Fused heads: lanes [0, zp) hold mu, lanes [zp, 2*zp) hold pre_sigma.
    head = jnp.dot(h2.astype(cdt), wh_ref[...],
                   preferred_element_type=jnp.float32) + bh_ref[...]

    if split_softplus:
        # Sigma half starts on a 128-lane boundary: slice it out and run the
        # (numerically stable) softplus only on those lanes; mu half is stored
        # untouched.  Halves EUP work, no iota/compare/select.
        mu = head[:, :zp]
        pre = head[:, zp:]
        sp = jnp.maximum(pre, 0.0) + jnp.log1p(jnp.exp(-jnp.abs(pre)))
        out_ref[:, :zp] = mu.astype(out_ref.dtype)
        out_ref[:, zp:] = sp.astype(out_ref.dtype)
    else:
        # Fallback (zp not lane-aligned, i.e. small z_dim): full-width softplus,
        # selected by a single (1, head_n) lane-index row that broadcasts.
        sp = jnp.maximum(head, 0.0) + jnp.log1p(jnp.exp(-jnp.abs(head)))
        lane = jax.lax.broadcasted_iota(jnp.int32, (1, head.shape[1]), 1)
        out_ref[...] = jnp.where(lane >= zp, sp, head).astype(out_ref.dtype)


def guide_forward(x, prep: GuideParams, *, tile_b=512, out_dtype=jnp.float32,
                  single_buffer_weights=False):
    """Returns (lambda_mu, lambda_sigma) of q(z|x) = Independent(Normal(mu, sigma), 1).

    `prep` must come from prepare_params (padded/cast once, reused every call).
    tile_b: 512 is a good v6e default; prefer 128-256 on v5e (128x128 MXU,
    single vector-store slot, 16 MiB default scoped VMEM).

    # TODO(synk): td.Independent(td.Normal(...)) distribution object has no Pallas
    # equivalent; downstream log_prob/sample consume (mu, sigma) directly.
    """
    B, D = x.shape
    assert D == prep.data_dim, "x feature dim does not match prepared params"
    Hp, half, head_n, Z = prep.hidden_p, prep.half, prep.head_n, prep.z_dim
    split = (half % LANE == 0)

    # --- batch tiling: minimal padding (<= 7 rows) and >= 2 grid steps when
    # B permits, so v7x's two TensorCores both get a "parallel" slice.
    n_steps = pl.cdiv(B, tile_b)
    if n_steps == 1 and B >= 16:
        n_steps = 2
    tb = _round_up(pl.cdiv(B, n_steps), 8)
    Bp = n_steps * tb
    xp = x if Bp == B else jnp.pad(x, ((0, Bp - B), (0, 0)))   # batch pad only if needed

    # --- explicit VMEM budget (v5e scoped default is 16 MiB; v7x physical 64 MiB).
    w_bytes = sum(a.size * a.dtype.itemsize
                  for a in (prep.w1, prep.b1, prep.w2, prep.b2, prep.wh, prep.bh))
    x_tile_bytes = tb * D * x.dtype.itemsize
    out_tile_bytes = tb * head_n * jnp.dtype(out_dtype).itemsize
    interm_bytes = tb * (2 * Hp + 2 * head_n) * 4            # h1/h2/head/softplus in f32
    w_buf = 1 if single_buffer_weights else 2                # BlockSpec double-buffers by default
    needed = w_buf * w_bytes + 2 * (x_tile_bytes + out_tile_bytes) + interm_bytes
    vmem_limit = min(max(32 * _MIB, int(needed * 1.5)), 64 * _MIB)

    # Weights/biases use constant index_maps -> DMA'd once, VMEM-resident across
    # the batch grid.  On v7x (64 MiB VMEM) with large hidden_dim, request
    # single-buffering for them (they never change across grid steps).
    wkw = {"pipeline_mode": pl.Buffered(1)} if single_buffer_weights else {}
    const = lambda shape: pl.BlockSpec(shape, lambda i: (0, 0), **wkw)

    flops = 2 * Bp * (D * Hp + Hp * Hp + Hp * head_n)
    transcendentals = 2 * Bp * (half if split else head_n)   # exp + log1p per element
    bytes_accessed = (xp.size * xp.dtype.itemsize + w_bytes
                      + Bp * head_n * jnp.dtype(out_dtype).itemsize)

    out = pl.pallas_call(
        functools.partial(guide_encoder_kernel, zp=half, split_softplus=split),
        out_shape=jax.ShapeDtypeStruct((Bp, head_n), out_dtype),
        grid=(n_steps,),
        in_specs=[
            pl.BlockSpec((tb, D), lambda i: (i, 0)),   # x: tiled over batch, true D width
            const((D, Hp)),                            # W1
            const((1, Hp)),                            # b1
            const((Hp, Hp)),                           # W2
            const((1, Hp)),                            # b2
            const((Hp, head_n)),                       # Wmu||Wsig (fused head)
            const((1, head_n)),                        # bmu||bsig
        ],
        out_specs=pl.BlockSpec((tb, head_n), lambda i: (i, 0)),
        compiler_params=pltpu.CompilerParams(
            dimension_semantics=("parallel",),
            vmem_limit_bytes=vmem_limit,
        ),
        cost_estimate=pl.CostEstimate(
            flops=flops,
            transcendentals=transcendentals,
            bytes_accessed=bytes_accessed,
        ),
    )(xp, prep.w1, prep.b1, prep.w2, prep.b2, prep.wh, prep.bh)

    mu = out[:B, :Z]
    sigma = out[:B, half:half + Z]
    return mu, sigma


def init_params(key, data_dim, hidden_dim, z_dim):
    ks = jax.random.split(key, 8)

    def lin(kw, fan_in, fan_out):
        scale = 1.0 / jnp.sqrt(jnp.float32(fan_in))
        return jax.random.uniform(kw, (fan_in, fan_out), jnp.float32, -scale, scale)

    w1 = lin(ks[0], data_dim, hidden_dim)
    b1 = jax.random.uniform(ks[1], (hidden_dim,), jnp.float32, -0.05, 0.05)
    w2 = lin(ks[2], hidden_dim, hidden_dim)
    b2 = jax.random.uniform(ks[3], (hidden_dim,), jnp.float32, -0.05, 0.05)
    wmu = lin(ks[4], hidden_dim, z_dim)
    bmu = jax.random.uniform(ks[5], (z_dim,), jnp.float32, -0.05, 0.05)
    wsig = lin(ks[6], hidden_dim, z_dim)
    bsig = jax.random.uniform(ks[7], (z_dim,), jnp.float32, -0.05, 0.05)
    return (w1, b1, w2, b2, wmu, bmu, wsig, bsig)


def _reference(x, params, dtype=jnp.float32):
    """Pure-JAX reference; `dtype` controls input quantization (f32 or bf16)."""
    w1, b1, w2, b2, wmu, bmu, wsig, bsig = params
    cast = lambda a: a.astype(dtype)
    h1 = jnp.maximum(
        jnp.dot(cast(x), cast(w1), preferred_element_type=jnp.float32) + b1, 0.0)
    h2 = jnp.maximum(
        jnp.dot(h1.astype(dtype), cast(w2), preferred_element_type=jnp.float32) + b2, 0.0)
    mu = jnp.dot(h2.astype(dtype), cast(wmu), preferred_element_type=jnp.float32) + bmu
    pre = jnp.dot(h2.astype(dtype), cast(wsig), preferred_element_type=jnp.float32) + bsig
    return mu, jax.nn.softplus(pre)


def _check(x, params, mu, sigma, z_dim):
    B = x.shape[0]
    mu_q, sigma_q = _reference(x, params, dtype=jnp.bfloat16)   # same quantization
    mu_f, sigma_f = _reference(x, params, dtype=jnp.float32)    # loose f32 check
    assert mu.shape == (B, z_dim) and sigma.shape == (B, z_dim)
    assert jnp.allclose(mu, mu_q, atol=2e-3, rtol=2e-3)
    assert jnp.allclose(sigma, sigma_q, atol=2e-3, rtol=2e-3)
    assert jnp.allclose(mu, mu_f, atol=5e-2, rtol=5e-2)
    assert jnp.allclose(sigma, sigma_f, atol=5e-2, rtol=5e-2)
    assert bool(jnp.all(sigma > 0.0))


if __name__ == "__main__":
    key = jax.random.PRNGKey(0)

    # Config A: typical small VAE guide (z_dim < 64 -> masked softplus path,
    # single grid step for the tiny batch).
    B, DATA_DIM, HIDDEN_DIM, Z_DIM = 8, 64, 32, 8
    k_x, k_p, k_x2, k_p2 = jax.random.split(key, 4)
    x = jax.random.normal(k_x, (B, DATA_DIM), jnp.float32)
    params = init_params(k_p, DATA_DIM, HIDDEN_DIM, Z_DIM)

    prep = prepare_params(params)                       # hoisted: pad/cast once
    fwd = jax.jit(lambda xx: guide_forward(xx, prep))   # hot path: no wrapper pad/cast
    mu, sigma = fwd(x)
    jax.block_until_ready((mu, sigma))
    _check(x, params, mu, sigma, Z_DIM)

    # Config B: z_dim lane-aligned -> split-softplus path; B >= 16 -> 2 grid steps
    # ("parallel" batch axis can shard across v7x's two TensorCores).
    B2, D2, H2, Z2 = 48, 64, 96, 128
    x2 = jax.random.normal(k_x2, (B2, D2), jnp.float32)
    params2 = init_params(k_p2, D2, H2, Z2)
    prep2 = prepare_params(params2)
    fwd2 = jax.jit(lambda xx: guide_forward(xx, prep2))
    mu2, sigma2 = fwd2(x2)
    jax.block_until_ready((mu2, sigma2))
    _check(x2, params2, mu2, sigma2, Z2)

    print("KERNEL_OK")
</pallas_src>

<mosaic_0001>
module attributes {stable_mosaic.version = 11 : i64} {
  func.func @guide_encoder_kernel(%arg0: i32, %arg1: memref<8x64xf32, #tpu.memory_space<vmem>>, %arg2: memref<64x128xbf16, #tpu.memory_space<vmem>>, %arg3: memref<1x128xf32, #tpu.memory_space<vmem>>, %arg4: memref<128x128xbf16, #tpu.memory_space<vmem>>, %arg5: memref<1x128xf32, #tpu.memory_space<vmem>>, %arg6: memref<128x128xbf16, #tpu.memory_space<vmem>>, %arg7: memref<1x128xf32, #tpu.memory_space<vmem>>, %arg8: memref<8x128xf32, #tpu.memory_space<vmem>>) attributes {dimension_semantics = [#tpu.dimension_semantics<parallel>], iteration_bounds = array<i64: 1>, scalar_prefetch = 0 : i64, scratch_operands = 0 : i64, tpu.core_type = #tpu.core_type<tc>, window_params = [{transform_indices = @transform_0, window_bounds = array<i64: 8, 64>}, {pipeline_mode = #tpu.pipeline_mode<synchronous>, transform_indices = @transform_1, window_bounds = array<i64: 64, 128>}, {pipeline_mode = #tpu.pipeline_mode<synchronous>, transform_indices = @transform_2, window_bounds = array<i64: 1, 128>}, {pipeline_mode = #tpu.pipeline_mode<synchronous>, transform_indices = @transform_3, window_bounds = array<i64: 128, 128>}, {pipeline_mode = #tpu.pipeline_mode<synchronous>, transform_indices = @transform_4, window_bounds = array<i64: 1, 128>}, {pipeline_mode = #tpu.pipeline_mode<synchronous>, transform_indices = @transform_5, window_bounds = array<i64: 128, 128>}, {pipeline_mode = #tpu.pipeline_mode<synchronous>, transform_indices = @transform_6, window_bounds = array<i64: 1, 128>}, {transform_indices = @transform_7, window_bounds = array<i64: 8, 128>}]} {
    %c0 = arith.constant 0 : index
    %c0_0 = arith.constant 0 : index
    %0 = vector.load %arg1[%c0, %c0_0] : memref<8x64xf32, #tpu.memory_space<vmem>>, vector<8x64xf32>
    %1 = arith.truncf %0 : vector<8x64xf32> to vector<8x64xbf16>
    %c0_1 = arith.constant 0 : index
    %c0_2 = arith.constant 0 : index
    %2 = vector.load %arg2[%c0_1, %c0_2] : memref<64x128xbf16, #tpu.memory_space<vmem>>, vector<64x128xbf16>
    %cst = arith.constant dense<0.000000e+00> : vector<8x128xf32>
    %3 = tpu.matmul %1, %2, %cst {dimension_numbers = #tpu.dot_dimension_numbers<[1], [0], [0], [1], [0, 0, 1, 1], [], []>} : vector<8x64xbf16>, vector<64x128xbf16>, vector<8x128xf32> -> vector<8x128xf32>
    %c0_3 = arith.constant 0 : index
    %c0_4 = arith.constant 0 : index
    %4 = vector.load %arg3[%c0_3, %c0_4] : memref<1x128xf32, #tpu.memory_space<vmem>>, vector<1x128xf32>
    %5 = vector.broadcast %4 : vector<1x128xf32> to vector<8x128xf32>
    %6 = arith.addf %3, %5 : vector<8x128xf32>
    %cst_5 = arith.constant 0.000000e+00 : f32
    %7 = vector.broadcast %cst_5 : f32 to vector<8x128xf32>
    %8 = arith.maximumf %6, %7 : vector<8x128xf32>
    %9 = arith.truncf %8 : vector<8x128xf32> to vector<8x128xbf16>
    %c0_6 = arith.constant 0 : index
    %c0_7 = arith.constant 0 : index
    %10 = vector.load %arg4[%c0_6, %c0_7] : memref<128x128xbf16, #tpu.memory_space<vmem>>, vector<128x128xbf16>
    %cst_8 = arith.constant dense<0.000000e+00> : vector<8x128xf32>
    %11 = tpu.matmul %9, %10, %cst_8 {dimension_numbers = #tpu.dot_dimension_numbers<[1], [0], [0], [1], [0, 0, 1, 1], [], []>} : vector<8x128xbf16>, vector<128x128xbf16>, vector<8x128xf32> -> vector<8x128xf32>
    %c0_9 = arith.constant 0 : index
    %c0_10 = arith.constant 0 : index
    %12 = vector.load %arg5[%c0_9, %c0_10] : memref<1x128xf32, #tpu.memory_space<vmem>>, vector<1x128xf32>
    %13 = vector.broadcast %12 : vector<1x128xf32> to vector<8x128xf32>
    %14 = arith.addf %11, %13 : vector<8x128xf32>
    %cst_11 = arith.constant 0.000000e+00 : f32
    %15 = vector.broadcast %cst_11 : f32 to vector<8x128xf32>
    %16 = arith.maximumf %14, %15 : vector<8x128xf32>
    %17 = arith.truncf %16 : vector<8x128xf32> to vector<8x128xbf16>
    %c0_12 = arith.constant 0 : index
    %c0_13 = arith.constant 0 : index
    %18 = vector.load %arg6[%c0_12, %c0_13] : memref<128x128xbf16, #tpu.memory_space<vmem>>, vector<128x128xbf16>
    %cst_14 = arith.constant dense<0.000000e+00> : vector<8x128xf32>
    %19 = tpu.matmul %17, %18, %cst_14 {dimension_numbers = #tpu.dot_dimension_numbers<[1], [0], [0], [1], [0, 0, 1, 1], [], []>} : vector<8x128xbf16>, vector<128x128xbf16>, vector<8x128xf32> -> vector<8x128xf32>
    %c0_15 = arith.constant 0 : index
    %c0_16 = arith.constant 0 : index
    %20 = vector.load %arg7[%c0_15, %c0_16] : memref<1x128xf32, #tpu.memory_space<vmem>>, vector<1x128xf32>
    %21 = vector.broadcast %20 : vector<1x128xf32> to vector<8x128xf32>
    %22 = arith.addf %19, %21 : vector<8x128xf32>
    %cst_17 = arith.constant 0.000000e+00 : f32
    %23 = vector.broadcast %cst_17 : f32 to vector<8x128xf32>
    %24 = arith.maximumf %22, %23 : vector<8x128xf32>
    %25 = math.absf %22 : vector<8x128xf32>
    %cst_18 = arith.constant 0.000000e+00 : f32
    %26 = vector.broadcast %cst_18 : f32 to vector<8x128xf32>
    %27 = arith.subf %26, %25 : vector<8x128xf32>
    %28 = math.exp %27 : vector<8x128xf32>
    %29 = math.log1p %28 : vector<8x128xf32>
    %30 = arith.addf %24, %29 : vector<8x128xf32>
    %31 = tpu.iota {dimensions = array<i32: 1>} : vector<1x128xi32>
    %c64_i32 = arith.constant 64 : i32
    %32 = vector.broadcast %c64_i32 : i32 to vector<1x128xi32>
    %33 = arith.cmpi sge, %31, %32 : vector<1x128xi32>
    %34 = vector.shape_cast %33 : vector<1x128xi1> to vector<1x128xi1>
    %35 = vector.broadcast %34 : vector<1x128xi1> to vector<8x128xi1>
    %36 = arith.select %35, %30, %22 : vector<8x128xi1>, vector<8x128xf32>
    %c0_19 = arith.constant 0 : index
    %c0_20 = arith.constant 0 : index
    %37 = vector.load %arg8[%c0_19, %c0_20] : memref<8x128xf32, #tpu.memory_space<vmem>>, vector<8x128xf32>
    tpu.vector_store %arg8[%c0_19, %c0_20], %36 {strides = array<i32>} : memref<8x128xf32, #tpu.memory_space<vmem>>, vector<8x128xf32>,
    return
  }
  func.func @transform_0(%arg0: i32) -> (i32, i32) {
    %c0_i32 = arith.constant 0 : i32
    %c0_i32_0 = arith.constant 0 : i32
    return %arg0, %c0_i32 : i32, i32
  }
  func.func @transform_1(%arg0: i32) -> (i32, i32) {
    %c0_i32 = arith.constant 0 : i32
    %c0_i32_0 = arith.constant 0 : i32
    %c0_i32_1 = arith.constant 0 : i32
    return %c0_i32, %c0_i32_0 : i32, i32
  }
  func.func @transform_2(%arg0: i32) -> (i32, i32) {
    %c0_i32 = arith.constant 0 : i32
    %c0_i32_0 = arith.constant 0 : i32
    %c0_i32_1 = arith.constant 0 : i32
    return %c0_i32, %c0_i32_0 : i32, i32
  }
  func.func @transform_3(%arg0: i32) -> (i32, i32) {
    %c0_i32 = arith.constant 0 : i32
    %c0_i32_0 = arith.constant 0 : i32
    %c0_i32_1 = arith.constant 0 : i32
    return %c0_i32, %c0_i32_0 : i32, i32
  }
  func.func @transform_4(%arg0: i32) -> (i32, i32) {
    %c0_i32 = arith.constant 0 : i32
    %c0_i32_0 = arith.constant 0 : i32
    %c0_i32_1 = arith.constant 0 : i32
    return %c0_i32, %c0_i32_0 : i32, i32
  }
  func.func @transform_5(%arg0: i32) -> (i32, i32) {
    %c0_i32 = arith.constant 0 : i32
    %c0_i32_0 = arith.constant 0 : i32
    %c0_i32_1 = arith.constant 0 : i32
    return %c0_i32, %c0_i32_0 : i32, i32
  }
  func.func @transform_6(%arg0: i32) -> (i32, i32) {
    %c0_i32 = arith.constant 0 : i32
    %c0_i32_0 = arith.constant 0 : i32
    %c0_i32_1 = arith.constant 0 : i32
    return %c0_i32, %c0_i32_0 : i32, i32
  }
  func.func @transform_7(%arg0: i32) -> (i32, i32) {
    %c0_i32 = arith.constant 0 : i32
    %c0_i32_0 = arith.constant 0 : i32
    return %arg0, %c0_i32 : i32, i32
  }
}

</mosaic_0001>

<llo_original>
// kernel: _lambda_.1
$region0: #{_lambda_.1}
  #allocation0 [shape = 'u32[]', space=smem, size = 0x4, offset = 0x4, fixed_abs, tag = 'smem constant byte address 0x4 - core index']
  #allocation1 [shape = 'u32[72,128]{1,0:T(1,128)}', space=vmem, size = 0x9000, scoped, tag = 'internal scratch']
  %s0 = inlined_call_operand.hbm [shape: f32[8,64], index: 0, kind: input, shape index: {}]
  %s1 = inlined_call_operand.hbm [shape: bf16[64,128], index: 1, kind: input, shape index: {}]
  %s2 = inlined_call_operand.hbm [shape: f32[1,128], index: 2, kind: input, shape index: {}]
  %s3 = inlined_call_operand.hbm [shape: bf16[128,128], index: 3, kind: input, shape index: {}]
  %s4 = inlined_call_operand.vmem [shape: f32[1,128], index: 4, kind: input, shape index: {}]
  %s5 = inlined_call_operand.hbm [shape: bf16[128,128], index: 5, kind: input, shape index: {}]
  %s6 = inlined_call_operand.vmem [shape: f32[1,128], index: 6, kind: input, shape index: {}]
  %s7 = inlined_call_operand.vmem [shape: f32[8,128], index: 7, kind: output, shape index: {}]
  %s8 = sld [smem:[#allocation0]]
  $region58: #{_lambda_.1} parent=0
    _
  %s10 = ssub.s32 1, %s8
  %s11 = scalar_select 0, %s10, %s8
  $region1: #{_lambda_.1} parent=0
    #allocation2 [shape = 'u8[4096]{0}', space=vmem, size = 0x1000, scoped, tag = 'input window, operand 0, single buffered']
    #allocation3 [shape = 's32[1]{0}', space=sflag, size = 0x4, scoped, tag = 'scoped memory for _lambda_.1']
    #allocation4 [shape = 'u8[16384]{0}', space=vmem, size = 0x4000, scoped, tag = 'input window, operand 1, single buffered']
    #allocation5 [shape = 's32[1]{0}', space=sflag, size = 0x4, scoped, tag = 'scoped memory for _lambda_.1']
    #allocation6 [shape = 'u8[512]{0}', space=vmem, size = 0x400, scoped, tag = 'input window, operand 2, single buffered']
    #allocation7 [shape = 'u8[32768]{0}', space=vmem, size = 0x8000, scoped, tag = 'input window, operand 3, single buffered']
    #allocation8 [shape = 's32[1]{0}', space=sflag, size = 0x4, scoped, tag = 'scoped memory for _lambda_.1']
    #allocation9 [shape = 'u8[32768]{0}', space=vmem, size = 0x8000, scoped, tag = 'input window, operand 5, single buffered']
    %12 = vsyncpa [#allocation3], 0
    %13 = vsyncpa [#allocation5], 0
    %14 = vsyncpa [#allocation8], 0
    // Predicated region
    $region2: #{_lambda_.1} parent=1 // pred_check
      _
    $region3: #{_lambda_.1} parent=1 // pred_check_branch
      %16 = sbr.rel (0) target = $region5
    $region4: #{_lambda_.1} parent=1 // pred_region
      %18 = vsyncadd [#allocation3], 0
      %s20 = sshll.u32 %s0, 4
      %s21 = int_to_ptr.hbm [resolvable:$true] %s20
      %s22 = sshll.u32 [#allocation2], 4
      %s23 = int_to_ptr.vmem [resolvable:$true] %s22
      %25 = dma.hbm_to_vmem [thread:$0]  %s21, 128, %s23, [#allocation3]
    $region5: #{_lambda_.1} parent=1 // pred_fallthru
      _
    // Predicated region
    $region6: #{_lambda_.1} parent=1 // pred_check
      _
    $region7: #{_lambda_.1} parent=1 // pred_check_branch
      %27 = sbr.rel (0) target = $region9
    $region8: #{_lambda_.1} parent=1 // pred_region
      %29 = vsyncadd [#allocation5], 0
      %s30 = sshll.u32 %s1, 4
      %s31 = int_to_ptr.hbm [resolvable:$true] %s30
      %s32 = sshll.u32 [#allocation4], 4
      %s33 = int_to_ptr.vmem [resolvable:$true] %s32
      %38 = dma.hbm_to_vmem [thread:$0]  %s31, 512, %s33, [#allocation5], 64, 64, 4
    $region9: #{_lambda_.1} parent=1 // pred_fallthru
      _
    // Predicated region
    $region10: #{_lambda_.1} parent=1 // pred_check
      _
    $region11: #{_lambda_.1} parent=1 // pred_check_branch
      %40 = sbr.rel (0) target = $region13
    $region12: #{_lambda_.1} parent=1 // pred_region
      %42 = vsyncadd [#allocation5], 0
      %s44 = sshll.u32 %s2, 4
      %s45 = int_to_ptr.hbm [resolvable:$true] %s44
      %s46 = sshll.u32 [#allocation6], 4
      %s47 = int_to_ptr.vmem [resolvable:$true] %s46
      %49 = dma.hbm_to_vmem [thread:$0]  %s45, 16, %s47, [#allocation5]
    $region13: #{_lambda_.1} parent=1 // pred_fallthru
      _
    // Predicated region
    $region14: #{_lambda_.1} parent=1 // pred_check
      _
    $region15: #{_lambda_.1} parent=1 // pred_check_branch
      %51 = sbr.rel (0) target = $region17
    $region16: #{_lambda_.1} parent=1 // pred_region
      %53 = vsyncadd [#allocation8], 0
      %s54 = sshll.u32 %s3, 4
      %s55 = int_to_ptr.hbm [resolvable:$true] %s54
      %s56 = sshll.u32 [#allocation7], 4
      %s57 = int_to_ptr.vmem [resolvable:$true] %s56
      %62 = dma.hbm_to_vmem [thread:$0]  %s55, 1024, %s57, [#allocation8], 64, 64, 4
    $region17: #{_lambda_.1} parent=1 // pred_fallthru
      _
    // Predicated region
    $region18: #{_lambda_.1} parent=1 // pred_check
      _
    $region19: #{_lambda_.1} parent=1 // pred_check_branch
      %64 = sbr.rel (0) target = $region21
    $region20: #{_lambda_.1} parent=1 // pred_region
      _
    $region21: #{_lambda_.1} parent=1 // pred_fallthru
      _
    // Predicated region
    $region22: #{_lambda_.1} parent=1 // pred_check
      _
    $region23: #{_lambda_.1} parent=1 // pred_check_branch
      %66 = sbr.rel (0) target = $region25
    $region24: #{_lambda_.1} parent=1 // pred_region
      %68 = vsyncadd [#allocation8], 0
      %s69 = sshll.u32 %s5, 4
      %s70 = int_to_ptr.hbm [resolvable:$true] %s69
      %s71 = sshll.u32 [#allocation9], 4
      %s72 = int_to_ptr.vmem [resolvable:$true] %s71
      %77 = dma.hbm_to_vmem [thread:$0]  %s70, 1024, %s72, [#allocation8], 64, 64, 4
    $region25: #{_lambda_.1} parent=1 // pred_fallthru
      _
    // Predicated region
    $region26: #{_lambda_.1} parent=1 // pred_check
      _
    $region27: #{_lambda_.1} parent=1 // pred_check_branch
      %79 = sbr.rel (0) target = $region29
    $region28: #{_lambda_.1} parent=1 // pred_region
      _
    $region29: #{_lambda_.1} parent=1 // pred_fallthru
      _
    // Predicated region
    $region30: #{_lambda_.1} parent=1 // pred_check
      _
    $region31: #{_lambda_.1} parent=1 // pred_check_branch
      %81 = sbr.rel (0) target = $region33
    $region32: #{_lambda_.1} parent=1 // pred_region
      %83 = dma.done [#allocation3], 128
    $region33: #{_lambda_.1} parent=1 // pred_fallthru
      _
    // Predicated region
    $region34: #{_lambda_.1} parent=1 // pred_check
      _
    $region35: #{_lambda_.1} parent=1 // pred_check_branch
      %85 = sbr.rel (0) target = $region37
    $region36: #{_lambda_.1} parent=1 // pred_region
      %87 = dma.done [#allocation5], 512
    $region37: #{_lambda_.1} parent=1 // pred_fallthru
      _
    // Predicated region
    $region38: #{_lambda_.1} parent=1 // pred_check
      _
    $region39: #{_lambda_.1} parent=1 // pred_check_branch
      %89 = sbr.rel (0) target = $region41
    $region40: #{_lambda_.1} parent=1 // pred_region
      %91 = dma.done [#allocation5], 16
    $region41: #{_lambda_.1} parent=1 // pred_fallthru
      _
    // Predicated region
    $region42: #{_lambda_.1} parent=1 // pred_check
      _
    $region43: #{_lambda_.1} parent=1 // pred_check_branch
      %93 = sbr.rel (0) target = $region45
    $region44: #{_lambda_.1} parent=1 // pred_region
      %95 = dma.done [#allocation8], 1024
    $region45: #{_lambda_.1} parent=1 // pred_fallthru
      _
    // Predicated region
    $region46: #{_lambda_.1} parent=1 // pred_check
      _
    $region47: #{_lambda_.1} parent=1 // pred_check_branch
      %97 = sbr.rel (0) target = $region49
    $region48: #{_lambda_.1} parent=1 // pred_region
      %99 = dma.done [#allocation8], 1024
    $region49: #{_lambda_.1} parent=1 // pred_fallthru
      _
    %v101 = vld [vmem:[#allocation2] sm:$0xff]
    %v102 = vpack.c.bf16 %v101, %v101
    %v103 = vld [vmem:[#allocation4] sm:$0xf]
    %v104 = vld [vmem:[#allocation4 + $0x4] sm:$0xf]
    %v105 = vld [vmem:[#allocation4 + $0x8] sm:$0xf]
    %v106 = vld [vmem:[#allocation4 + $0xc] sm:$0xf]
    %v107 = vld [vmem:[#allocation4 + $0x10] sm:$0xf]
    %v108 = vld [vmem:[#allocation4 + $0x14] sm:$0xf]
    %v109 = vld [vmem:[#allocation4 + $0x18] sm:$0xf]
    %v110 = vld [vmem:[#allocation4 + $0x1c] sm:$0xf]
    %v111 = vld [vmem:[#allocation6] sm:$0x1]
    %v113 = vperm.slane %v111, 0
    %v123 = vunpack.c.l.b16 %v103
    %v124 = vunpack.c.l.b16 %v104
    %v125 = vunpack.c.l.b16 %v105
    %v126 = vunpack.c.l.b16 %v106
    %v127 = vunpack.c.l.b16 %v107
    %v128 = vunpack.c.l.b16 %v108
    %v129 = vunpack.c.l.b16 %v109
    %v130 = vunpack.c.l.b16 %v110
    %v131 = vpack.c.b16 %v124, %v123
    %v132 = vpack.c.b16 %v126, %v125
    %v133 = vpack.c.b16 %v128, %v127
    %v134 = vpack.c.b16 %v130, %v129
    %vm139 = vcmask 523264
    %v141 = vsel %vm139, %v102, 0
    %143 = vmatpush.bf16.msra.mxu0 0
    %144 = vmatpush.bf16.msra.mxu0 0
    %145 = vmatpush.bf16.msra.mxu0 0
    %146 = vmatpush.bf16.msra.mxu0 0
    %147 = vmatpush.bf16.msra.mxu0 %v134
    %148 = vmatpush.bf16.msra.mxu0 %v133
    %149 = vmatpush.bf16.msra.mxu0 %v132
    %150 = vmatpush.bf16.msra.mxu0 %v131
    %151 = vmatmul.bf16.gmra.mxu0 %v141
    %v152 = vpop.f32.mrf.mxu0
    %v153 = vadd.f32 %v113, %v152
    %v154 = vpop.f32.mrf.mxu0
    %155 = vdwg.mxu0
    %v156 = vmax.f32 %v153, 0.0
    %v157 = vpack.c.bf16 %v156, %v156
    %v158 = vld [vmem:[#allocation7] sm:$0xf]
    %v159 = vld [vmem:[#allocation7 + $0x4] sm:$0xf]
    %v160 = vld [vmem:[#allocation7 + $0x8] sm:$0xf]
    %v161 = vld [vmem:[#allocation7 + $0xc] sm:$0xf]
    %v162 = vld [vmem:[#allocation7 + $0x10] sm:$0xf]
    %v163 = vld [vmem:[#allocation7 + $0x14] sm:$0xf]
    %v164 = vld [vmem:[#allocation7 + $0x18] sm:$0xf]
    %v165 = vld [vmem:[#allocation7 + $0x1c] sm:$0xf]
    %v166 = vld [vmem:[#allocation7 + $0x20] sm:$0xf]
    %v167 = vld [vmem:[#allocation7 + $0x24] sm:$0xf]
    %v168 = vld [vmem:[#allocation7 + $0x28] sm:$0xf]
    %v169 = vld [vmem:[#allocation7 + $0x2c] sm:$0xf]
    %v170 = vld [vmem:[#allocation7 + $0x30] sm:$0xf]
    %v171 = vld [vmem:[#allocation7 + $0x34] sm:$0xf]
    %v172 = vld [vmem:[#allocation7 + $0x38] sm:$0xf]
    %v173 = vld [vmem:[#allocation7 + $0x3c] sm:$0xf]
    %v174 = vld [vmem:[%s4] sm:$0x1]
    %v176 = vperm.slane %v174, 0
    %v194 = vunpack.c.l.b16 %v158
    %v195 = vunpack.c.l.b16 %v159
    %v196 = vunpack.c.l.b16 %v160
    %v197 = vunpack.c.l.b16 %v161
    %v198 = vunpack.c.l.b16 %v162
    %v199 = vunpack.c.l.b16 %v163
    %v200 = vunpack.c.l.b16 %v164
    %v201 = vunpack.c.l.b16 %v165
    %v202 = vunpack.c.l.b16 %v166
    %v203 = vunpack.c.l.b16 %v167
    %v204 = vunpack.c.l.b16 %v168
    %v205 = vunpack.c.l.b16 %v169
    %v206 = vunpack.c.l.b16 %v170
    %v207 = vunpack.c.l.b16 %v171
    %v208 = vunpack.c.l.b16 %v172
    %v209 = vunpack.c.l.b16 %v173
    %v210 = vpack.c.b16 %v195, %v194
    %v211 = vpack.c.b16 %v197, %v196
    %v212 = vpack.c.b16 %v199, %v198
    %v213 = vpack.c.b16 %v201, %v200
    %v214 = vpack.c.b16 %v203, %v202
    %v215 = vpack.c.b16 %v205, %v204
    %v216 = vpack.c.b16 %v207, %v206
    %v217 = vpack.c.b16 %v209, %v208
    %226 = vmatpush.bf16.msra.mxu0 %v217
    %227 = vmatpush.bf16.msra.mxu0 %v216
    %228 = vmatpush.bf16.msra.mxu0 %v215
    %229 = vmatpush.bf16.msra.mxu0 %v214
    %230 = vmatpush.bf16.msra.mxu0 %v213
    %231 = vmatpush.bf16.msra.mxu0 %v212
    %232 = vmatpush.bf16.msra.mxu0 %v211
    %233 = vmatpush.bf16.msra.mxu0 %v210
    %234 = vmatmul.bf16.gmra.mxu0 %v157
    %v235 = vpop.f32.mrf.mxu0
    %v236 = vadd.f32 %v176, %v235
    %v237 = vpop.f32.mrf.mxu0
    %238 = vdwg.mxu0
    %v239 = vmax.f32 %v236, 0.0
    %v240 = vpack.c.bf16 %v239, %v239
    %v241 = vld [vmem:[#allocation9] sm:$0xf]
    %v242 = vld [vmem:[#allocation9 + $0x4] sm:$0xf]
    %v243 = vld [vmem:[#allocation9 + $0x8] sm:$0xf]
    %v244 = vld [vmem:[#allocation9 + $0xc] sm:$0xf]
    %v245 = vld [vmem:[#allocation9 + $0x10] sm:$0xf]
    %v246 = vld [vmem:[#allocation9 + $0x14] sm:$0xf]
    %v247 = vld [vmem:[#allocation9 + $0x18] sm:$0xf]
    %v248 = vld [vmem:[#allocation9 + $0x1c] sm:$0xf]
    %v249 = vld [vmem:[#allocation9 + $0x20] sm:$0xf]
    %v250 = vld [vmem:[#allocation9 + $0x24] sm:$0xf]
    %v251 = vld [vmem:[#allocation9 + $0x28] sm:$0xf]
    %v252 = vld [vmem:[#allocation9 + $0x2c] sm:$0xf]
    %v253 = vld [vmem:[#allocation9 + $0x30] sm:$0xf]
    %v254 = vld [vmem:[#allocation9 + $0x34] sm:$0xf]
    %v255 = vld [vmem:[#allocation9 + $0x38] sm:$0xf]
    %v256 = vld [vmem:[#allocation9 + $0x3c] sm:$0xf]
    %v257 = vld [vmem:[%s6] sm:$0x1]
    %v259 = vperm.slane %v257, 0
    %v277 = vunpack.c.l.b16 %v241
    %v278 = vunpack.c.l.b16 %v242
    %v279 = vunpack.c.l.b16 %v243
    %v280 = vunpack.c.l.b16 %v244
    %v281 = vunpack.c.l.b16 %v245
    %v282 = vunpack.c.l.b16 %v246
    %v283 = vunpack.c.l.b16 %v247
    %v284 = vunpack.c.l.b16 %v248
    %v285 = vunpack.c.l.b16 %v249
    %v286 = vunpack.c.l.b16 %v250
    %v287 = vunpack.c.l.b16 %v251
    %v288 = vunpack.c.l.b16 %v252
    %v289 = vunpack.c.l.b16 %v253
    %v290 = vunpack.c.l.b16 %v254
    %v291 = vunpack.c.l.b16 %v255
    %v292 = vunpack.c.l.b16 %v256
    %v293 = vpack.c.b16 %v278, %v277
    %v294 = vpack.c.b16 %v280, %v279
    %v295 = vpack.c.b16 %v282, %v281
    %v296 = vpack.c.b16 %v284, %v283
    %v297 = vpack.c.b16 %v286, %v285
    %v298 = vpack.c.b16 %v288, %v287
    %v299 = vpack.c.b16 %v290, %v289
    %v300 = vpack.c.b16 %v292, %v291
    %309 = vmatpush.bf16.msra.mxu0 %v300
    %310 = vmatpush.bf16.msra.mxu0 %v299
    %311 = vmatpush.bf16.msra.mxu0 %v298
    %312 = vmatpush.bf16.msra.mxu0 %v297
    %313 = vmatpush.bf16.msra.mxu0 %v296
    %314 = vmatpush.bf16.msra.mxu0 %v295
    %315 = vmatpush.bf16.msra.mxu0 %v294
    %316 = vmatpush.bf16.msra.mxu0 %v293
    %317 = vmatmul.bf16.gmra.mxu0 %v240
    %v318 = vpop.f32.mrf.mxu0
    %v319 = vadd.f32 %v259, %v318
    %v320 = vpop.f32.mrf.mxu0
    %321 = vdwg.mxu0
    %v322 = vmax.f32 %v319, 0.0
    %v323 = vand.u32 2147483647, %v319
    %v324 = vsub.f32 0.0, %v323
    %v325 = vmul.f32 %v324, 1.442695
    %v326 = vpow.pop %v325
    %v327 = vadd.f32 %v326, 1.0
    %v328 = vlog2.pop %v327
    %v329 = vmul.f32 %v328, 0.6931472
    %v330 = vmul.f32 -0.5, %v326
    %v331 = vadd.f32 %v330, 1.0
    %v332 = vmul.f32 %v331, %v326
    %v333 = vand.u32 2147483647, %v326
    %vm334 = vcmp.lt.f32.partialorder %v333, 0.0004427343
    %v335 = vsel %vm334, %v332, %v329
    %v336 = vadd.f32 %v322, %v335
    %v337 = vlaneseq
    %v338 = vand.u32 %v337, 127
    %vm339 = vcmp.ge.s32.totalorder %v338, 64
    %v340 = vsel %vm339, 1, 0
    %vm341 = vcmp.eq.s32.totalorder %v340, 1
    %v342 = vsel %vm341, %v336, %v319
    %343 = vst [vmem:[%s7] sm:$0xff] %v342
    // Predicated region
    $region50: #{_lambda_.1} parent=1 // pred_check
      _
    $region51: #{_lambda_.1} parent=1 // pred_check_branch
      %345 = sbr.rel (0) target = $region53
    $region52: #{_lambda_.1} parent=1 // pred_region
      _
    $region53: #{_lambda_.1} parent=1 // pred_fallthru
      _
    // Predicated region
    $region54: #{_lambda_.1} parent=1 // pred_check
      _
    $region55: #{_lambda_.1} parent=1 // pred_check_branch
      %347 = sbr.rel (0) target = $region57
    $region56: #{_lambda_.1} parent=1 // pred_region
      _
    $region57: #{_lambda_.1} parent=1 // pred_fallthru
      _
    %348 = vsyncpa [#allocation3], 1
    %349 = vsyncpa [#allocation5], 1
    %350 = vsyncpa [#allocation8], 1

</llo_original>
